<compile_context>
chip_gen: v7x
topology: tpu7x:2x2x1
jax: 0.10.0
libtpu: 0.0.40
codegen_flags: <defaults>
</compile_context>

<pallas_src>
import functools

import jax
import jax.numpy as jnp
from jax.experimental import pallas as pl
from jax.experimental.pallas import tpu as pltpu


def linear_sigmoid_kernel(x_ref, w_ref, b_ref, o_ref, acc_ref):
    """One (batch-tile, feature-tile) grid step of sigmoid(x @ w.T + b).

    x_ref:  [TB, TK] VMEM        w_ref: [1, TK] VMEM (lane-dense)
    b_ref:  [1, 1]   SMEM scalar o_ref: [TB, 1] VMEM (resident across K axis)
    acc_ref:[TB, 1]  f32 VMEM scratch accumulator
    """
    k = pl.program_id(1)

    @pl.when(k == 0)
    def _init():
        acc_ref[...] = jnp.zeros_like(acc_ref)

    # N=1 "matmul" -> VPU elementwise multiply + XLU lane reduce (no MXU).
    x = x_ref[...].astype(jnp.float32)
    acc_ref[...] += jnp.sum(x * w_ref[...], axis=-1, keepdims=True)

    @pl.when(k == pl.num_programs(1) - 1)
    def _finalize():
        z = acc_ref[...] + b_ref[0, 0]          # scalar bias from SMEM
        o_ref[...] = jax.nn.sigmoid(z).astype(o_ref.dtype)


def _round_up(x, m):
    return ((x + m - 1) // m) * m


def _choose_f_tile(F, max_tk=2048):
    # Single block over F when it is small; otherwise a multiple-of-128 tile
    # that divides F exactly (boundary F blocks would read unspecified data
    # into the reduction, so we only split when it divides evenly).
    if F <= max_tk:
        return F
    for cand in range(max_tk, 0, -128):
        if F % cand == 0:
            return cand
    # TODO(synk): ragged-F tiling would need a masked tail accumulation.
    return F


def _choose_batch_tile(B, row_bytes, budget_bytes):
    if B <= 8:
        return B  # block equals the full batch dim -> no 8-row constraint.
    tb = max(8, (budget_bytes // max(row_bytes, 1)) // 8 * 8)
    if tb * 2 >= B and B > 16:
        # Tile covers more than half the batch: split ~evenly so the
        # "parallel" axis gives both TensorCores (v7x megacore) work.
        tb = max(8, _round_up(-(-B // 2), 8))
    # Never exceed the array; the ragged tail block is write-clipped.
    return min(tb, (B // 8) * 8)


@functools.partial(jax.jit, static_argnames=("tile_budget_bytes",))
def model_forward(x, weight, bias, tile_budget_bytes=2 * 1024 * 1024):
    """x: [B, F] f32/bf16; weight: [1, F] (PyTorch layout); bias: [1].

    Returns sigmoid(x @ weight.T + bias) of shape [B, 1] in f32.
    """
    B, F = x.shape
    w = weight.reshape(1, F).astype(jnp.float32)   # keep F on the lane axis
    b = bias.reshape(1, 1).astype(jnp.float32)     # scalar -> SMEM

    itemsize = x.dtype.itemsize
    tk = _choose_f_tile(F)
    tb = _choose_batch_tile(B, tk * itemsize, tile_budget_bytes)

    n_b = -(-B // tb)          # ragged tail handled by Pallas block clipping
    n_k = -(-F // tk)          # == F // tk by construction

    # Explicit VMEM ceiling from the actual double-buffered footprint.
    x_tile_bytes = tb * tk * itemsize
    vmem_bytes = 2 * (x_tile_bytes + tk * 4 + tb * 4) + tb * 4
    vmem_limit = int(min(max(2 * vmem_bytes + (2 << 20), 16 << 20), 48 << 20))

    cost = pl.CostEstimate(
        flops=2 * B * F,
        transcendentals=B,
        bytes_accessed=B * F * itemsize + F * 4 + B * 4,
    )

    out = pl.pallas_call(
        linear_sigmoid_kernel,
        out_shape=jax.ShapeDtypeStruct((B, 1), jnp.float32),
        grid=(n_b, n_k),
        in_specs=[
            pl.BlockSpec((tb, tk), lambda i, k: (i, k)),            # x streamed
            pl.BlockSpec((1, tk), lambda i, k: (0, k)),             # weight
            pl.BlockSpec(memory_space=pltpu.MemorySpace.SMEM),      # bias scalar
        ],
        out_specs=pl.BlockSpec((tb, 1), lambda i, k: (i, 0)),       # resident over k
        scratch_shapes=[pltpu.VMEM((tb, 1), jnp.float32)],
        compiler_params=pltpu.CompilerParams(
            dimension_semantics=("parallel", "arbitrary"),
            vmem_limit_bytes=vmem_limit,
        ),
        cost_estimate=cost,
    )(x, w, b)

    return out


def reference_forward(x, weight, bias):
    # Pure-JAX reference replicating torch.sigmoid(nn.Linear(x)).
    return jax.nn.sigmoid(x.astype(jnp.float32) @ weight.T + bias)


if __name__ == "__main__":
    key = jax.random.PRNGKey(0)
    kx, kw, kb, kx2 = jax.random.split(key, 4)

    # Small shapes consistent with the module: batch=8, n_input_features=32.
    B, F = 8, 32
    x = jax.random.normal(kx, (B, F), dtype=jnp.float32)

    # Deterministic parameter init (mimics nn.Linear uniform(-1/sqrt(F), 1/sqrt(F))).
    bound = 1.0 / jnp.sqrt(jnp.float32(F))
    weight = jax.random.uniform(kw, (1, F), minval=-bound, maxval=bound,
                                dtype=jnp.float32)
    bias = jax.random.uniform(kb, (1,), minval=-bound, maxval=bound,
                              dtype=jnp.float32)

    y = model_forward(x, weight, bias)
    jax.block_until_ready(y)
    y_ref = reference_forward(x, weight, bias)
    assert y.shape == (B, 1)
    assert jnp.allclose(y, y_ref, atol=1e-5, rtol=1e-5)

    # Exercise the multi-tile + ragged-tail (write-clipped boundary) path.
    B2 = 1037  # not a multiple of 8 -> ragged boundary block, 2 batch tiles
    x2 = jax.random.normal(kx2, (B2, F), dtype=jnp.float32)
    y2 = model_forward(x2, weight, bias)
    jax.block_until_ready(y2)
    y2_ref = reference_forward(x2, weight, bias)
    assert y2.shape == (B2, 1)
    assert jnp.allclose(y2, y2_ref, atol=1e-5, rtol=1e-5)

    print("KERNEL_OK")
</pallas_src>

<mosaic_0001>
module attributes {stable_mosaic.version = 11 : i64} {
  func.func @linear_sigmoid_kernel(%arg0: i32, %arg1: i32, %arg2: memref<8x32xf32, #tpu.memory_space<vmem>>, %arg3: memref<1x32xf32, #tpu.memory_space<vmem>>, %arg4: memref<1x1xf32, #tpu.memory_space<smem>>, %arg5: memref<8x1xf32, #tpu.memory_space<vmem>>, %arg6: memref<8x1xf32, #tpu.memory_space<vmem>>) attributes {dimension_semantics = [#tpu.dimension_semantics<parallel>, #tpu.dimension_semantics<arbitrary>], iteration_bounds = array<i64: 1, 1>, scalar_prefetch = 0 : i64, scratch_operands = 1 : i64, tpu.core_type = #tpu.core_type<tc>, window_params = [{transform_indices = @transform_0, window_bounds = array<i64: 8, 32>}, {transform_indices = @transform_1, window_bounds = array<i64: 1, 32>}, {transform_indices = @transform_2, window_bounds = array<i64: 1, 1>}, {transform_indices = @transform_3, window_bounds = array<i64: 8, 1>}]} {
    %c0_i32 = arith.constant 0 : i32
    %0 = arith.cmpi eq, %arg1, %c0_i32 : i32
    %1 = arith.extui %0 : i1 to i32
    %c0_i32_0 = arith.constant 0 : i32
    %2 = arith.cmpi ne, %1, %c0_i32_0 : i32
    scf.if %2 {
      %cst_10 = arith.constant 0.000000e+00 : f32
      %15 = vector.broadcast %cst_10 : f32 to vector<8x1xf32>
      %c0_11 = arith.constant 0 : index
      %c0_12 = arith.constant 0 : index
      %16 = vector.load %arg6[%c0_11, %c0_12] : memref<8x1xf32, #tpu.memory_space<vmem>>, vector<8x1xf32>
      tpu.vector_store %arg6[%c0_11, %c0_12], %15 {strides = array<i32>} : memref<8x1xf32, #tpu.memory_space<vmem>>, vector<8x1xf32>,
    } else {
    }
    %c0 = arith.constant 0 : index
    %c0_1 = arith.constant 0 : index
    %3 = vector.load %arg2[%c0, %c0_1] : memref<8x32xf32, #tpu.memory_space<vmem>>, vector<8x32xf32>
    %c0_2 = arith.constant 0 : index
    %c0_3 = arith.constant 0 : index
    %4 = vector.load %arg6[%c0_2, %c0_3] : memref<8x1xf32, #tpu.memory_space<vmem>>, vector<8x1xf32>
    %c0_4 = arith.constant 0 : index
    %c0_5 = arith.constant 0 : index
    %5 = vector.load %arg3[%c0_4, %c0_5] : memref<1x32xf32, #tpu.memory_space<vmem>>, vector<1x32xf32>
    %6 = vector.broadcast %5 : vector<1x32xf32> to vector<8x32xf32>
    %7 = arith.mulf %3, %6 : vector<8x32xf32>
    %cst = arith.constant dense<0.000000e+00> : vector<8xf32>
    %8 = vector.multi_reduction <add>, %7, %cst [1] : vector<8x32xf32> to vector<8xf32>
    %9 = vector.shape_cast %8 : vector<8xf32> to vector<8x1xf32>
    %10 = arith.addf %4, %9 : vector<8x1xf32>
    %c0_6 = arith.constant 0 : index
    %c0_7 = arith.constant 0 : index
    %11 = vector.load %arg6[%c0_6, %c0_7] : memref<8x1xf32, #tpu.memory_space<vmem>>, vector<8x1xf32>
    tpu.vector_store %arg6[%c0_6, %c0_7], %10 {strides = array<i32>} : memref<8x1xf32, #tpu.memory_space<vmem>>, vector<8x1xf32>,
    %c0_i32_8 = arith.constant 0 : i32
    %12 = arith.cmpi eq, %arg1, %c0_i32_8 : i32
    %13 = arith.extui %12 : i1 to i32
    %c0_i32_9 = arith.constant 0 : i32
    %14 = arith.cmpi ne, %13, %c0_i32_9 : i32
    scf.if %14 {
      %c0_10 = arith.constant 0 : index
      %c0_11 = arith.constant 0 : index
      %15 = vector.load %arg6[%c0_10, %c0_11] : memref<8x1xf32, #tpu.memory_space<vmem>>, vector<8x1xf32>
      %c0_12 = arith.constant 0 : index
      %c0_13 = arith.constant 0 : index
      %16 = memref.load %arg4[%c0_12, %c0_13] : memref<1x1xf32, #tpu.memory_space<smem>>
      %17 = vector.broadcast %16 : f32 to vector<8x1xf32>
      %18 = arith.addf %15, %17 : vector<8x1xf32>
      %19 = arith.negf %18 : vector<8x1xf32>
      %20 = math.exp %19 : vector<8x1xf32>
      %cst_14 = arith.constant 1.000000e+00 : f32
      %21 = vector.broadcast %cst_14 : f32 to vector<8x1xf32>
      %22 = arith.addf %21, %20 : vector<8x1xf32>
      %23 = arith.divf %21, %22 : vector<8x1xf32>
      %c0_15 = arith.constant 0 : index
      %c0_16 = arith.constant 0 : index
      %24 = vector.load %arg5[%c0_15, %c0_16] : memref<8x1xf32, #tpu.memory_space<vmem>>, vector<8x1xf32>
      tpu.vector_store %arg5[%c0_15, %c0_16], %23 {strides = array<i32>} : memref<8x1xf32, #tpu.memory_space<vmem>>, vector<8x1xf32>,
    } else {
    }
    return
  }
  func.func @transform_0(%arg0: i32, %arg1: i32) -> (i32, i32) {
    %c0_i32 = arith.constant 0 : i32
    return %arg0, %arg1 : i32, i32
  }
  func.func @transform_1(%arg0: i32, %arg1: i32) -> (i32, i32) {
    %c0_i32 = arith.constant 0 : i32
    %c0_i32_0 = arith.constant 0 : i32
    return %c0_i32, %arg1 : i32, i32
  }
  func.func @transform_2(%arg0: i32, %arg1: i32) -> (i32, i32) {
    %c0_i32 = arith.constant 0 : i32
    %c0_i32_0 = arith.constant 0 : i32
    %c0_i32_1 = arith.constant 0 : i32
    return %c0_i32, %c0_i32_0 : i32, i32
  }
  func.func @transform_3(%arg0: i32, %arg1: i32) -> (i32, i32) {
    %c0_i32 = arith.constant 0 : i32
    %c0_i32_0 = arith.constant 0 : i32
    return %arg0, %c0_i32 : i32, i32
  }
}

</mosaic_0001>

<llo_original>
// kernel: model_forward.1
$region0: #{model_forward.1}
  #allocation0 [shape = 'u32[]', space=smem, size = 0x4, offset = 0x4, fixed_abs, tag = 'smem constant byte address 0x4 - core index']
  #allocation1 [shape = 'u32[144,128]{1,0:T(1,128)}', space=vmem, size = 0x12000, scoped, tag = 'internal scratch']
  #allocation2 [shape = 'f32[8,1]{1,0:T(8,128)}', space=vmem, size = 0x1000, scoped, tag = 'scratch operand']
  #allocation3 [shape = 'f32[1,1]{1,0:T(1,128)S(6)}', space=smem, size = 0x200, scoped, tag = 'scoped memory for model_forward.1']
  %s0 = inlined_call_operand.hbm [shape: f32[8,32], index: 0, kind: input, shape index: {}]
  %s1 = inlined_call_operand.vmem [shape: f32[1,32], index: 1, kind: input, shape index: {}]
  %s2 = inlined_call_operand.<no memory space> [shape: f32[1,1], index: 2, kind: input, shape index: {}]
  %s3 = inlined_call_operand.vmem [shape: f32[8,1], index: 3, kind: output, shape index: {}]
  %s4 = sld [smem:[#allocation0]]
  $region34: #{model_forward.1} parent=0
    _
  %s6 = ssub.s32 1, %s4
  %s7 = scalar_select 0, %s6, %s4
  %8 = sst [smem:[#allocation3]] %s2
  $region1: #{model_forward.1} parent=0
    #allocation4 [shape = 'u8[4096]{0}', space=vmem, size = 0x1000, scoped, tag = 'input window, operand 0, single buffered']
    #allocation5 [shape = 's32[1]{0}', space=sflag, size = 0x4, scoped, tag = 'scoped memory for model_forward.1']
    %9 = vsyncpa [#allocation5], 0
    // Predicated region
    $region2: #{model_forward.1} parent=1 // pred_check
      _
    $region3: #{model_forward.1} parent=1 // pred_check_branch
      %11 = sbr.rel (0) target = $region5
    $region4: #{model_forward.1} parent=1 // pred_region
      %s13 = ssub.s32 128, 128
      %14 = vsyncadd [#allocation5], %s13
      %s16 = sshll.u32 [#allocation4], 4
      %s17 = int_to_ptr.vmem [resolvable:$true] %s16
      %19 = dma.hbm_to_vmem [thread:$0]  %s0, 128, %s17, [#allocation5]
    $region5: #{model_forward.1} parent=1 // pred_fallthru
      _
    // Predicated region
    $region6: #{model_forward.1} parent=1 // pred_check
      _
    $region7: #{model_forward.1} parent=1 // pred_check_branch
      %21 = sbr.rel (0) target = $region9
    $region8: #{model_forward.1} parent=1 // pred_region
      _
    $region9: #{model_forward.1} parent=1 // pred_fallthru
      _
    // Predicated region
    $region10: #{model_forward.1} parent=1 // pred_check
      _
    $region11: #{model_forward.1} parent=1 // pred_check_branch
      %23 = sbr.rel (0) target = $region13
    $region12: #{model_forward.1} parent=1 // pred_region
      _
    $region13: #{model_forward.1} parent=1 // pred_fallthru
      _
    // Predicated region
    $region14: #{model_forward.1} parent=1 // pred_check
      _
    $region15: #{model_forward.1} parent=1 // pred_check_branch
      %25 = sbr.rel (0) target = $region17
    $region16: #{model_forward.1} parent=1 // pred_region
      %26 = dma.done [#allocation5], 128
    $region17: #{model_forward.1} parent=1 // pred_fallthru
      _
    %p27 = scmp.eq.s32.totalorder 0, 0
    // Predicated region
    $region18: #{model_forward.1} parent=1 // pred_check
      %p28 = pneg %p27
    $region19: #{model_forward.1} parent=1 // pred_check_branch
      %30 = sbr.rel (%p28) target = $region21
    $region20: #{model_forward.1} parent=1 // pred_region
      %vm31 = vcmask 7168
      %32 = vst.msk [vmem:[#allocation2] sm:$0xff] %vm31, 0.0
    $region21: #{model_forward.1} parent=1 // pred_fallthru
      _
    %v33 = vld [vmem:[#allocation4] sm:$0xff]
    %v34 = vld [vmem:[#allocation2] sm:$0xff]
    %v35 = vld [vmem:[%s1] sm:$0x1]
    %v37 = vlaneseq
    %v38 = vshrl.u32 %v37, 7
    %v39 = vsub.s32 0, %v38
    %v40 = vrot.slane %v35, %v39
    %v42 = vmul.f32 %v33, %v40
    %vm43 = vcmask 261120
    %v44 = vsel %vm43, %v42, 0.0
    %45 = vadd.xlane.f32.xlu0 %v44
    %v46 = vpop.xlane.xlu0 %45
    %v47 = vadd.f32 %v34, %v46
    %vm48 = vcmask 7168
    %49 = vst.msk [vmem:[#allocation2] sm:$0xff] %vm48, %v47
    // Predicated region
    $region22: #{model_forward.1} parent=1 // pred_check
      %p50 = pneg %p27
    $region23: #{model_forward.1} parent=1 // pred_check_branch
      %52 = sbr.rel (%p50) target = $region25
    $region24: #{model_forward.1} parent=1 // pred_region
      %v53 = vld [vmem:[#allocation2] sm:$0xff]
      %s54 = sld [smem:[#allocation3]]
      %v55 = vstv %s54
      %v56 = vadd.f32 %v53, %v55
      %v57 = vxor.u32 %v56, 2147483648
      %v58 = vmul.f32 %v57, 1.442695
      %v59 = vpow.pop %v58
      %v60 = vadd.f32 %v59, 1.0
      %v61 = vrcp.pop %v60
      %v62 = vmul.f32 1.0, %v61
      %63 = vst.msk [vmem:[%s3] sm:$0xff] %vm48, %v62
    $region25: #{model_forward.1} parent=1 // pred_fallthru
      _
    // Predicated region
    $region26: #{model_forward.1} parent=1 // pred_check
      _
    $region27: #{model_forward.1} parent=1 // pred_check_branch
      %65 = sbr.rel (0) target = $region29
    $region28: #{model_forward.1} parent=1 // pred_region
      _
    $region29: #{model_forward.1} parent=1 // pred_fallthru
      _
    // Predicated region
    $region30: #{model_forward.1} parent=1 // pred_check
      _
    $region31: #{model_forward.1} parent=1 // pred_check_branch
      %67 = sbr.rel (0) target = $region33
    $region32: #{model_forward.1} parent=1 // pred_region
      _
    $region33: #{model_forward.1} parent=1 // pred_fallthru
      _
    %68 = vsyncpa [#allocation5], 1

</llo_original>
